<compile_context>
chip_gen: v5e
topology: v5e:2x2
jax: 0.10.0
libtpu: 0.0.40
codegen_flags: <defaults>
</compile_context>

<pallas_src>
import functools

import jax
import jax.numpy as jnp
from jax.experimental import pallas as pl
from jax.experimental.pallas import tpu as pltpu

_SUB = 16  # bf16 sublane tile: keep row-block sizes / offsets 16-aligned


def _round_up(x, m):
    return ((x + m - 1) // m) * m


def _vmem_limit_bytes():
    # Generation-aware VMEM budget: ~3/4 of the physical per-core VMEM
    # (v5e/v6e: 128 MiB -> 96 MiB, v7x: 64 MiB -> 48 MiB), leaving headroom
    # for the compiler's own scratch and pipeline buffers.
    try:
        cap = getattr(pltpu.get_tpu_info(), "vmem_capacity_bytes", 0)
        if cap:
            return int(cap) * 3 // 4
    except Exception:
        pass
    return 48 * 1024 * 1024


def _masked_similarity(feat_c_ref, *, inv_temperature, block_rows):
    """exp(<anchor_block, contrast>/T) with the self-contrast diagonal zeroed.

    Anchor rows are sliced out of the resident contrast block (no separate,
    double-buffered anchor DMA).  Zero-padded contrast columns are NOT masked
    here: they contribute exactly exp(0) = 1 per row and are removed later by
    a constant correction.
    """
    i = pl.program_id(0)
    row0 = pl.multiple_of(i * block_rows, block_rows)
    xa = feat_c_ref[pl.ds(row0, block_rows), :]      # [TB, Dp] bf16 anchors
    xc = feat_c_ref[...]                             # [Bp, Dp] bf16 contrast
    # A @ A^T via contraction on the last dim of both operands: bf16 into the
    # MXU, f32 accumulation, no transpose / relayout of the contrast matrix.
    logits = jax.lax.dot_general(
        xa, xc, dimension_numbers=(((1,), (1,)), ((), ())),
        preferred_element_type=jnp.float32) * inv_temperature
    # NOTE: no row-max subtraction before exp (matches the f32 torch
    # reference); extremely small temperatures can overflow exp to inf and
    # trip the finite guard, exactly like the reference.
    sim = jnp.exp(logits)                            # [TB, Bp] f32
    tb, bp = sim.shape
    row_ids = row0 + jax.lax.broadcasted_iota(jnp.int32, (tb, 1), 0)
    col_ids = jax.lax.broadcasted_iota(jnp.int32, (1, bp), 1)
    return jnp.where(row_ids != col_ids, sim, 0.0)


def _write_row_terms(out_ref, pos, denom, w_ref, *, batch_size, block_rows):
    i = pl.program_id(0)
    # logist = log(pos / (pos + neg)) with neg = denom - pos == log(pos) - log(denom)
    term = -(jnp.log(pos) - jnp.log(denom)) * w_ref[...]        # [TB, 1]
    tb = term.shape[0]
    row_valid = (i * block_rows
                 + jax.lax.broadcasted_iota(jnp.int32, (tb, 1), 0)) < batch_size
    out_ref[...] = jnp.where(row_valid, term, 0.0)


def _scl_labels_kernel(feat_c_ref, lab_col_ref, lab_row_ref, w_ref, out_ref, *,
                       inv_temperature, eps, batch_size, block_rows, n_pad):
    sim_v = _masked_similarity(feat_c_ref, inv_temperature=inv_temperature,
                               block_rows=block_rows)
    # Positive mask built in-kernel: [TB,1] == [1,Bp] -> [TB,Bp] broadcast.
    eqf = (lab_col_ref[...] == lab_row_ref[...]).astype(jnp.float32)
    posmask = eqf + eps if eps != 0.0 else eqf       # eps is a static constant
    pos = jnp.sum(sim_v * posmask, axis=-1, keepdims=True)      # [TB, 1]
    denom = jnp.sum(sim_v, axis=-1, keepdims=True)               # [TB, 1]
    # Each zero-padded contrast column contributes exactly exp(0)=1 to the
    # denominator (and eps to pos, since padded labels are -1): remove them
    # with exact constant corrections instead of a second masking pass.
    if n_pad:
        denom = denom - jnp.float32(n_pad)
        if eps != 0.0:
            pos = pos - jnp.float32(eps * n_pad)
    _write_row_terms(out_ref, pos, denom, w_ref,
                     batch_size=batch_size, block_rows=block_rows)


def _scl_mask_kernel(feat_c_ref, mask_ref, w_ref, out_ref, *,
                     inv_temperature, batch_size, block_rows, n_pad):
    sim_v = _masked_similarity(feat_c_ref, inv_temperature=inv_temperature,
                               block_rows=block_rows)
    pos = jnp.sum(sim_v * mask_ref[...].astype(jnp.float32),
                  axis=-1, keepdims=True)
    denom = jnp.sum(sim_v, axis=-1, keepdims=True)
    if n_pad:  # padded mask columns are 0, so only the denominator needs it
        denom = denom - jnp.float32(n_pad)
    _write_row_terms(out_ref, pos, denom, w_ref,
                     batch_size=batch_size, block_rows=block_rows)


def st_scl_loss(features, labels=None, weight=None, mask=None,
                temperature=0.07, base_temperature=0.07, contrast_mode='all',
                block_rows=256):
    """JAX/Pallas equivalent of st_SCL.forward for 2-D features [B, D]."""
    del base_temperature  # stored by the module but unused by forward's math
    if contrast_mode not in ('all', 'one'):
        raise ValueError(f'Unknown mode: {contrast_mode}')
    if labels is not None and mask is not None:
        raise ValueError('Cannot define both `labels` and `mask`')

    features = jnp.asarray(features, jnp.float32)
    if features.ndim != 2:
        # TODO(synk): the reference `torch.mm` only supports the 2-D feature
        # path; >2-D inputs fail in PyTorch as well, so only [B, D] is handled.
        raise ValueError('`features` must be [B, D] for this kernel')
    B, D = features.shape

    # L2 normalize once in the wrapper (F.normalize, p=2, eps=1e-12).
    norm = jnp.sqrt(jnp.sum(features * features, axis=-1, keepdims=True))
    feats_n = features / jnp.maximum(norm, 1e-12)

    # Per-sample weights: weight[label_i] (ones when no weight is given).
    if weight is not None:
        if labels is None:
            raise ValueError('`weight` requires `labels`')
        w = jnp.asarray(weight, jnp.float32)[
            jnp.asarray(labels).reshape(-1).astype(jnp.int32)]
    else:
        w = jnp.ones((B,), jnp.float32)

    # Tiling: feature dim (lanes) -> multiple of 128; batch dim -> row blocks
    # that are multiples of 16 (bf16 sublane tile), with >= 2 row blocks when
    # the batch allows it so the "parallel" grid axis can use both v7x cores.
    d_pad = _round_up(max(D, 128), 128)
    b_al = _round_up(B, _SUB)
    half = _round_up(b_al // 2, _SUB) if b_al >= 2 * _SUB else b_al
    tb = max(_SUB, min(_round_up(block_rows, _SUB), half))
    b_pad = _round_up(B, tb)
    num_blocks = b_pad // tb
    n_pad = b_pad - B

    # bf16 features for the MXU (f32 accumulation in-kernel).
    feats_p = jnp.zeros((b_pad, d_pad), jnp.bfloat16).at[:B, :D].set(
        feats_n.astype(jnp.bfloat16))
    w_p = jnp.zeros((b_pad, 1), jnp.float32).at[:B, 0].set(w)

    # Grid-invariant resident contrast block: single-buffered.
    # TODO(synk): for very large B*D (v7x 64 MiB VMEM), add a trailing
    # "arbitrary" grid axis over contrast-column tiles with pos/denom scratch
    # accumulators instead of keeping the full contrast block resident.
    feat_c_spec = pl.BlockSpec((b_pad, d_pad), lambda i: (0, 0),
                               pipeline_mode=pl.Buffered(1))
    col_spec = pl.BlockSpec((tb, 1), lambda i: (i, 0))      # per-row vectors
    out_spec = pl.BlockSpec((tb, 1), lambda i: (i, 0))

    if mask is None:
        if labels is None:
            # SimCLR-degenerate case: mask = eye(B) exactly (no +1e-7);
            # pos == 0 -> -inf -> finite guard returns 0, as in the reference.
            lab = jnp.arange(B, dtype=jnp.int32)
            eps = 0.0
        else:
            lab = jnp.asarray(labels).reshape(-1).astype(jnp.int32)
            if lab.shape[0] != B:
                raise ValueError('Num of labels does not match num of features')
            eps = 1e-7
        lab_p = jnp.full((b_pad,), -1, jnp.int32).at[:B].set(lab)
        kernel = functools.partial(
            _scl_labels_kernel, inv_temperature=1.0 / float(temperature),
            eps=float(eps), batch_size=B, block_rows=tb, n_pad=n_pad)
        in_specs = [feat_c_spec, col_spec,
                    pl.BlockSpec((1, b_pad), lambda i: (0, 0),
                                 pipeline_mode=pl.Buffered(1)),
                    col_spec]
        operands = (feats_p, lab_p.reshape(b_pad, 1), lab_p.reshape(1, b_pad),
                    w_p)
    else:
        # bf16 mask stream: exact for 0/1 masks (the usual case); non-binary
        # masks lose ~3 decimal digits of precision.
        mask_f = jnp.asarray(mask, jnp.float32)
        mask_p = jnp.zeros((b_pad, b_pad), jnp.bfloat16).at[:B, :B].set(
            mask_f.astype(jnp.bfloat16))
        kernel = functools.partial(
            _scl_mask_kernel, inv_temperature=1.0 / float(temperature),
            batch_size=B, block_rows=tb, n_pad=n_pad)
        in_specs = [feat_c_spec,
                    pl.BlockSpec((tb, b_pad), lambda i: (i, 0)),
                    col_spec]
        operands = (feats_p, mask_p, w_p)

    # Each program writes the per-row loss terms of its anchor-row block
    # (disjoint output blocks -> the grid axis is "parallel" for v7x).
    terms = pl.pallas_call(
        kernel,
        out_shape=jax.ShapeDtypeStruct((b_pad, 1), jnp.float32),
        grid=(num_blocks,),
        in_specs=in_specs,
        out_specs=out_spec,
        compiler_params=pltpu.CompilerParams(
            dimension_semantics=("parallel",),
            vmem_limit_bytes=_vmem_limit_bytes()),
    )(*operands)

    # Tiny epilogue: mean over the real batch + the torch inf/nan guard.
    loss = jnp.sum(terms) / jnp.float32(B)
    loss = jnp.where(jnp.isfinite(loss), loss, jnp.float32(0.0))
    return loss


if __name__ == "__main__":
    key = jax.random.PRNGKey(0)
    kf, kl, kf2, km = jax.random.split(key, 4)

    B, D, NUM_CLASSES = 8, 32, 4
    features = jax.random.normal(kf, (B, D), dtype=jnp.float32)
    labels = jax.random.randint(kl, (B,), 0, NUM_CLASSES)
    class_weight = jnp.array([1.0, 0.5, 2.0, 1.5], dtype=jnp.float32)

    # supervised, weighted
    loss_w = st_scl_loss(features, labels=labels, weight=class_weight,
                         temperature=0.07)
    # supervised, unweighted
    loss_s = st_scl_loss(features, labels=labels, temperature=0.07)
    # unsupervised (SimCLR-degenerate) case: labels=None, mask=None
    loss_u = st_scl_loss(features, temperature=0.07)
    # explicit user-mask path, with a non-multiple-of-8 batch to exercise padding
    B2 = 10
    f2 = jax.random.normal(kf2, (B2, D), dtype=jnp.float32)
    m2 = (jax.random.uniform(km, (B2, B2)) > 0.5).astype(jnp.float32)
    loss_m = st_scl_loss(f2, mask=m2, temperature=0.07)

    for v in (loss_w, loss_s, loss_u, loss_m):
        jax.block_until_ready(v)
    print("KERNEL_OK")
</pallas_src>

<mosaic_0001>
module attributes {stable_mosaic.version = 11 : i64} {
  func.func @_scl_labels_kernel(%arg0: i32, %arg1: memref<16x128xbf16, #tpu.memory_space<vmem>>, %arg2: memref<16x1xi32, #tpu.memory_space<vmem>>, %arg3: memref<1x16xi32, #tpu.memory_space<vmem>>, %arg4: memref<16x1xf32, #tpu.memory_space<vmem>>, %arg5: memref<16x1xf32, #tpu.memory_space<vmem>>) attributes {dimension_semantics = [#tpu.dimension_semantics<parallel>], iteration_bounds = array<i64: 1>, scalar_prefetch = 0 : i64, scratch_operands = 0 : i64, tpu.core_type = #tpu.core_type<tc>, window_params = [{pipeline_mode = #tpu.pipeline_mode<synchronous>, transform_indices = @transform_0, window_bounds = array<i64: 16, 128>}, {transform_indices = @transform_1, window_bounds = array<i64: 16, 1>}, {pipeline_mode = #tpu.pipeline_mode<synchronous>, transform_indices = @transform_2, window_bounds = array<i64: 1, 16>}, {transform_indices = @transform_3, window_bounds = array<i64: 16, 1>}, {transform_indices = @transform_4, window_bounds = array<i64: 16, 1>}]} {
    %c16_i32 = arith.constant 16 : i32
    %0 = arith.muli %arg0, %c16_i32 : i32
    %1 = tpu.assume_multiple %0, 16 : i32
    %2 = arith.index_cast %1 : i32 to index
    %c0 = arith.constant 0 : index
    %3 = vector.load %arg1[%2, %c0] : memref<16x128xbf16, #tpu.memory_space<vmem>>, vector<16x128xbf16>
    %c0_0 = arith.constant 0 : index
    %c0_1 = arith.constant 0 : index
    %4 = vector.load %arg1[%c0_0, %c0_1] : memref<16x128xbf16, #tpu.memory_space<vmem>>, vector<16x128xbf16>
    %cst = arith.constant dense<0.000000e+00> : vector<16x16xf32>
    %5 = tpu.matmul %3, %4, %cst {dimension_numbers = #tpu.dot_dimension_numbers<[1], [1], [0], [0], [0, 0, 1, 0], [], []>} : vector<16x128xbf16>, vector<16x128xbf16>, vector<16x16xf32> -> vector<16x16xf32>
    %cst_2 = arith.constant 14.2857141 : f32
    %6 = vector.broadcast %cst_2 : f32 to vector<16x16xf32>
    %7 = arith.mulf %5, %6 : vector<16x16xf32>
    %8 = math.exp %7 : vector<16x16xf32>
    %9 = tpu.iota {dimensions = array<i32: 0>} : vector<16x1xi32>
    %10 = vector.broadcast %1 : i32 to vector<16x1xi32>
    %11 = arith.addi %10, %9 : vector<16x1xi32>
    %12 = tpu.iota {dimensions = array<i32: 1>} : vector<1x16xi32>
    %13 = vector.broadcast %11 : vector<16x1xi32> to vector<16x16xi32>
    %14 = vector.broadcast %12 : vector<1x16xi32> to vector<16x16xi32>
    %15 = arith.cmpi ne, %13, %14 : vector<16x16xi32>
    %cst_3 = arith.constant 0.000000e+00 : f32
    %16 = vector.broadcast %cst_3 : f32 to vector<16x16xf32>
    %17 = arith.select %15, %8, %16 : vector<16x16xi1>, vector<16x16xf32>
    %c0_4 = arith.constant 0 : index
    %c0_5 = arith.constant 0 : index
    %18 = vector.load %arg2[%c0_4, %c0_5] : memref<16x1xi32, #tpu.memory_space<vmem>>, vector<16x1xi32>
    %c0_6 = arith.constant 0 : index
    %c0_7 = arith.constant 0 : index
    %19 = vector.load %arg3[%c0_6, %c0_7] : memref<1x16xi32, #tpu.memory_space<vmem>>, vector<1x16xi32>
    %20 = vector.broadcast %18 : vector<16x1xi32> to vector<16x16xi32>
    %21 = vector.broadcast %19 : vector<1x16xi32> to vector<16x16xi32>
    %22 = arith.cmpi eq, %20, %21 : vector<16x16xi32>
    %23 = arith.extui %22 : vector<16x16xi1> to vector<16x16xi32>
    %24 = arith.sitofp %23 : vector<16x16xi32> to vector<16x16xf32>
    %cst_8 = arith.constant 1.000000e-07 : f32
    %25 = vector.broadcast %cst_8 : f32 to vector<16x16xf32>
    %26 = arith.addf %24, %25 : vector<16x16xf32>
    %27 = arith.mulf %17, %26 : vector<16x16xf32>
    %cst_9 = arith.constant dense<0.000000e+00> : vector<16xf32>
    %28 = vector.multi_reduction <add>, %27, %cst_9 [1] : vector<16x16xf32> to vector<16xf32>
    %29 = vector.shape_cast %28 : vector<16xf32> to vector<16x1xf32>
    %cst_10 = arith.constant dense<0.000000e+00> : vector<16xf32>
    %30 = vector.multi_reduction <add>, %17, %cst_10 [1] : vector<16x16xf32> to vector<16xf32>
    %31 = vector.shape_cast %30 : vector<16xf32> to vector<16x1xf32>
    %cst_11 = arith.constant 8.000000e+00 : f32
    %32 = vector.broadcast %cst_11 : f32 to vector<16x1xf32>
    %33 = arith.subf %31, %32 : vector<16x1xf32>
    %cst_12 = arith.constant 8.000000e-07 : f32
    %34 = vector.broadcast %cst_12 : f32 to vector<16x1xf32>
    %35 = arith.subf %29, %34 : vector<16x1xf32>
    %36 = math.log %35 : vector<16x1xf32>
    %37 = math.log %33 : vector<16x1xf32>
    %38 = arith.subf %36, %37 : vector<16x1xf32>
    %cst_13 = arith.constant 0.000000e+00 : f32
    %39 = vector.broadcast %cst_13 : f32 to vector<16x1xf32>
    %40 = arith.subf %39, %38 : vector<16x1xf32>
    %c0_14 = arith.constant 0 : index
    %c0_15 = arith.constant 0 : index
    %41 = vector.load %arg4[%c0_14, %c0_15] : memref<16x1xf32, #tpu.memory_space<vmem>>, vector<16x1xf32>
    %42 = arith.mulf %40, %41 : vector<16x1xf32>
    %c16_i32_16 = arith.constant 16 : i32
    %43 = arith.muli %arg0, %c16_i32_16 : i32
    %44 = tpu.iota {dimensions = array<i32: 0>} : vector<16x1xi32>
    %45 = vector.broadcast %43 : i32 to vector<16x1xi32>
    %46 = arith.addi %45, %44 : vector<16x1xi32>
    %c8_i32 = arith.constant 8 : i32
    %47 = vector.broadcast %c8_i32 : i32 to vector<16x1xi32>
    %48 = arith.cmpi slt, %46, %47 : vector<16x1xi32>
    %cst_17 = arith.constant 0.000000e+00 : f32
    %49 = vector.broadcast %cst_17 : f32 to vector<16x1xf32>
    %50 = arith.select %48, %42, %49 : vector<16x1xi1>, vector<16x1xf32>
    %c0_18 = arith.constant 0 : index
    %c0_19 = arith.constant 0 : index
    %51 = vector.load %arg5[%c0_18, %c0_19] : memref<16x1xf32, #tpu.memory_space<vmem>>, vector<16x1xf32>
    tpu.vector_store %arg5[%c0_18, %c0_19], %50 {strides = array<i32>} : memref<16x1xf32, #tpu.memory_space<vmem>>, vector<16x1xf32>,
    return
  }
  func.func @transform_0(%arg0: i32) -> (i32, i32) {
    %c0_i32 = arith.constant 0 : i32
    %c0_i32_0 = arith.constant 0 : i32
    %c0_i32_1 = arith.constant 0 : i32
    return %c0_i32, %c0_i32_0 : i32, i32
  }
  func.func @transform_1(%arg0: i32) -> (i32, i32) {
    %c0_i32 = arith.constant 0 : i32
    %c0_i32_0 = arith.constant 0 : i32
    return %arg0, %c0_i32 : i32, i32
  }
  func.func @transform_2(%arg0: i32) -> (i32, i32) {
    %c0_i32 = arith.constant 0 : i32
    %c0_i32_0 = arith.constant 0 : i32
    %c0_i32_1 = arith.constant 0 : i32
    return %c0_i32, %c0_i32_0 : i32, i32
  }
  func.func @transform_3(%arg0: i32) -> (i32, i32) {
    %c0_i32 = arith.constant 0 : i32
    %c0_i32_0 = arith.constant 0 : i32
    return %arg0, %c0_i32 : i32, i32
  }
  func.func @transform_4(%arg0: i32) -> (i32, i32) {
    %c0_i32 = arith.constant 0 : i32
    %c0_i32_0 = arith.constant 0 : i32
    return %arg0, %c0_i32 : i32, i32
  }
}

</mosaic_0001>

<llo_original>
// kernel: tpu_custom_call.1
$region0: #{tpu_custom_call.1}
  #allocation0 [shape = 'u32[]', space=smem, size = 0x4, offset = 0x4, fixed_abs, tag = 'smem constant byte address 0x4 - core index']
  #allocation1 [shape = 'u32[72,128]{1,0:T(1,128)}', space=vmem, size = 0x9000, scoped, tag = 'internal scratch']
  %s0 = inlined_call_operand.vmem [shape: bf16[16,128], index: 0, kind: input, shape index: {}]
  %s1 = inlined_call_operand.vmem [shape: s32[16,1], index: 1, kind: input, shape index: {}]
  %s2 = inlined_call_operand.vmem [shape: s32[1,16], index: 2, kind: input, shape index: {}]
  %s3 = inlined_call_operand.vmem [shape: f32[16,1], index: 3, kind: input, shape index: {}]
  %s4 = inlined_call_operand.vmem [shape: f32[16,1], index: 4, kind: output, shape index: {}]
  %s5 = sld [smem:[#allocation0]]
  $region26: #{tpu_custom_call.1} parent=0
    _
  %s7 = ssub.s32 1, %s5
  %s8 = scalar_select 0, %s7, %s5
  // Predicated region
  $region2: #{tpu_custom_call.1} parent=0 // pred_check
    _
  $region3: #{tpu_custom_call.1} parent=0 // pred_check_branch
    %10 = sbr.rel (0) target = $region5
  $region4: #{tpu_custom_call.1} parent=0 // pred_region
    _
  $region5: #{tpu_custom_call.1} parent=0 // pred_fallthru
    _
  // Predicated region
  $region6: #{tpu_custom_call.1} parent=0 // pred_check
    _
  $region7: #{tpu_custom_call.1} parent=0 // pred_check_branch
    %12 = sbr.rel (0) target = $region9
  $region8: #{tpu_custom_call.1} parent=0 // pred_region
    _
  $region9: #{tpu_custom_call.1} parent=0 // pred_fallthru
    _
  // Predicated region
  $region10: #{tpu_custom_call.1} parent=0 // pred_check
    _
  $region11: #{tpu_custom_call.1} parent=0 // pred_check_branch
    %14 = sbr.rel (0) target = $region13
  $region12: #{tpu_custom_call.1} parent=0 // pred_region
    _
  $region13: #{tpu_custom_call.1} parent=0 // pred_fallthru
    _
  // Predicated region
  $region14: #{tpu_custom_call.1} parent=0 // pred_check
    _
  $region15: #{tpu_custom_call.1} parent=0 // pred_check_branch
    %16 = sbr.rel (0) target = $region17
  $region16: #{tpu_custom_call.1} parent=0 // pred_region
    _
  $region17: #{tpu_custom_call.1} parent=0 // pred_fallthru
    _
  %s18 = smul.u32 0, 16
  %s19 = sshra.s32 %s18, 3
  %s20 = sand.u32 %s18, 7
  %s21 = smul.addr %s19, 4
  %s22 = scalar_lea.vmem %s0, %s21
  %v23 = vld [vmem:[%s22] sm:$0xf]
  %v24 = vld [vmem:[%s22 + $0x4] sm:$0xf]
  %v25 = vld [vmem:[%s0] sm:$0xf]
  %v26 = vld [vmem:[%s0 + $0x4] sm:$0xf]
  %v29 = vunpack.c.l.b16 %v23
  %v30 = vunpack.c.l.b16 %v24
  %v31 = vpack.c.b16 %v30, %v29
  %v35 = vunpack.c.l.b16 %v25
  %v36 = vunpack.c.l.b16 %v26
  %v37 = vpack.c.b16 %v36, %v35
  %39 = vmatpush.bf16.xpose.msra.mxu0 0
  %40 = vmatpush.bf16.xpose.msra.mxu0 0
  %41 = vmatpush.bf16.xpose.msra.mxu0 0
  %42 = vmatpush.bf16.xpose.msra.mxu0 0
  %43 = vmatpush.bf16.xpose.msra.mxu0 0
  %44 = vmatpush.bf16.xpose.msra.mxu0 0
  %45 = vmatpush.bf16.xpose.msra.mxu0 0
  %46 = vmatpush.bf16.xpose.msra.mxu0 %v37
  %47 = vmatmul.bf16.gmra.mxu0 %v31
  %v48 = vpop.f32.mrf.mxu0
  %v49 = vadd.f32 0.0, %v48
  %v50 = vpop.f32.mrf.mxu0
  %v51 = vadd.f32 0.0, %v50
  %52 = vdwg.mxu0
  %v53 = vmul.f32 %v49, 14.285714
  %v54 = vmul.f32 %v51, 14.285714
  %v55 = vmul.f32 %v53, 1.442695
  %v56 = vpow.pop %v55
  %v57 = vmul.f32 %v54, 1.442695
  %v58 = vpow.pop %v57
  %v59 = vlaneseq
  %v60 = vshrl.u32 %v59, 7
  %v61 = vadd.s32 %v60, 8
  %v62 = vstv %s18
  %v63 = vadd.s32 %v62, %v60
  %v64 = vadd.s32 %v62, %v61
  %v65 = vlaneseq
  %v66 = vand.u32 %v65, 127
  %vm67 = vcmp.ne.s32.totalorder %v63, %v66
  %vm68 = vcmp.ne.s32.totalorder %v64, %v66
  %v69 = vsel %vm67, %v56, 0.0
  %v70 = vsel %vm68, %v58, 0.0
  %v71 = vld [vmem:[%s1] sm:$0xff]
  %v72 = vld [vmem:[%s1 + $0x8] sm:$0xff]
  %v73 = vld [vmem:[%s2] sm:$0x1]
  %74 = vset.pattern.permute.xlu0 0
  %75 = vperm.xlu0 %74, %v71
  %v76 = vpop.permute.xlu0 %75
  %77 = vset.pattern.permute.xlu0 0
  %78 = vperm.xlu0 %77, %v72
  %v79 = vpop.permute.xlu0 %78
  %v80 = vperm.slane %v73, 0
  %vm81 = vcmp.eq.s32.totalorder %v76, %v80
  %vm82 = vcmp.eq.s32.totalorder %v79, %v80
  %v83 = vsel %vm81, 1, 0
  %v84 = vsel %vm82, 1, 0
  %v85 = vcvt.s32.f32 %v83
  %v86 = vcvt.s32.f32 %v84
  %v87 = vadd.f32 %v85, 1e-07
  %v88 = vadd.f32 %v86, 1e-07
  %v89 = vmul.f32 %v69, %v87
  %v90 = vmul.f32 %v70, %v88
  %vm91 = vcmask 130048
  %v92 = vsel %vm91, %v89, 0.0
  %93 = vadd.xlane.f32.xlu0 %v92
  %v94 = vpop.xlane.xlu0 %93
  %v95 = vsel %vm91, %v90, 0.0
  %96 = vadd.xlane.f32.xlu0 %v95
  %v97 = vpop.xlane.xlu0 %96
  %v98 = vsel %vm91, %v69, 0.0
  %99 = vadd.xlane.f32.xlu0 %v98
  %v100 = vpop.xlane.xlu0 %99
  %v101 = vsel %vm91, %v70, 0.0
  %102 = vadd.xlane.f32.xlu0 %v101
  %v103 = vpop.xlane.xlu0 %102
  %v104 = vsub.f32 %v100, 8.0
  %v105 = vsub.f32 %v103, 8.0
  %v106 = vsub.f32 %v94, 8e-07
  %v107 = vsub.f32 %v97, 8e-07
  %v108 = vlog2.pop %v106
  %v109 = vmul.f32 %v108, 0.6931472
  %v110 = vlog2.pop %v107
  %v111 = vmul.f32 %v110, 0.6931472
  %v112 = vlog2.pop %v104
  %v113 = vmul.f32 %v112, 0.6931472
  %v114 = vlog2.pop %v105
  %v115 = vmul.f32 %v114, 0.6931472
  %v116 = vsub.f32 %v109, %v113
  %v117 = vsub.f32 %v111, %v115
  %v118 = vsub.f32 0.0, %v116
  %v119 = vsub.f32 0.0, %v117
  %v120 = vld [vmem:[%s3] sm:$0xff]
  %v121 = vld [vmem:[%s3 + $0x8] sm:$0xff]
  %v122 = vmul.f32 %v118, %v120
  %v123 = vmul.f32 %v119, %v121
  %v124 = vstv %s18
  %v125 = vadd.s32 %v124, %v60
  %v126 = vadd.s32 %v124, %v61
  %vm127 = vcmp.lt.s32.totalorder %v125, 8
  %vm128 = vcmp.lt.s32.totalorder %v126, 8
  %v129 = vsel %vm127, %v122, 0.0
  %v130 = vsel %vm128, %v123, 0.0
  %vm131 = vcmask 7168
  %132 = vst.msk [vmem:[%s4] sm:$0xff] %vm131, %v129
  %133 = vst.msk [vmem:[%s4 + $0x8] sm:$0xff] %vm131, %v130
  // Predicated region
  $region18: #{tpu_custom_call.1} parent=0 // pred_check
    _
  $region19: #{tpu_custom_call.1} parent=0 // pred_check_branch
    %135 = sbr.rel (0) target = $region21
  $region20: #{tpu_custom_call.1} parent=0 // pred_region
    _
  $region21: #{tpu_custom_call.1} parent=0 // pred_fallthru
    _
  // Predicated region
  $region22: #{tpu_custom_call.1} parent=0 // pred_check
    _
  $region23: #{tpu_custom_call.1} parent=0 // pred_check_branch
    %137 = sbr.rel (0) target = $region25
  $region24: #{tpu_custom_call.1} parent=0 // pred_region
    _
  $region25: #{tpu_custom_call.1} parent=0 // pred_fallthru
    _

</llo_original>
